<compile_context>
chip_gen: v5e
topology: v5e:2x2
jax: 0.10.0
libtpu: 0.0.40
codegen_flags: <defaults>
</compile_context>

<pallas_src>
import functools

import numpy as np
import jax
import jax.numpy as jnp
from jax import lax
from jax.experimental import pallas as pl
from jax.experimental.pallas import tpu as pltpu

_BN_EPS = 1e-5
_VMEM_LIMIT = 64 * 1024 * 1024


# ----------------------------------------------------------------------------
# Kernel 1: 1x1 conv (matmul over channels) fused with BN scale/bias + ReLU
# ----------------------------------------------------------------------------
def _mm_bn_relu_kernel(x_ref, w_ref, scale_ref, bias_ref, o_ref):
    y = jnp.dot(x_ref[...], w_ref[...], preferred_element_type=jnp.float32)
    y = y * scale_ref[...] + bias_ref[...]
    o_ref[...] = jnp.maximum(y, 0.0).astype(o_ref.dtype)


def conv1x1_bn_relu(x_flat, w, scale, bias, *, tm=512, out_dtype=jnp.float32):
    """x_flat: (M, Cin) bf16 pixels; w: (Cin, Cout) bf16; scale/bias: (1, Cout) f32."""
    M, cin = x_flat.shape
    cout = w.shape[1]
    if M <= tm:
        tm = M                       # single full-extent tile
    else:
        tm = max(8, (tm // 8) * 8)   # sublane-aligned; tail block is masked
    return pl.pallas_call(
        _mm_bn_relu_kernel,
        out_shape=jax.ShapeDtypeStruct((M, cout), out_dtype),
        grid=(pl.cdiv(M, tm),),
        in_specs=[
            pl.BlockSpec((tm, cin), lambda i: (i, 0)),
            pl.BlockSpec((cin, cout), lambda i: (0, 0)),
            pl.BlockSpec((1, cout), lambda i: (0, 0)),
            pl.BlockSpec((1, cout), lambda i: (0, 0)),
        ],
        out_specs=pl.BlockSpec((tm, cout), lambda i: (i, 0)),
        compiler_params=pltpu.CompilerParams(
            dimension_semantics=("parallel",),
            vmem_limit_bytes=_VMEM_LIMIT),
    )(x_flat, w, scale, bias)


# ----------------------------------------------------------------------------
# Kernel 2: 3x3 dilated (atrous) conv fused with BN scale/bias + ReLU.
# Grid = (batch, row_tile). The padded input stays in HBM; each step manually
# DMAs a (TILE_H + 2*rate)-row slab (halo included) into a 2-slot VMEM scratch
# (prefetching the next tile's slab while this one computes) and accumulates
# the 9 dilated taps as big (TILE_H*W, Cin)@(Cin, Cout) matmuls.
# ----------------------------------------------------------------------------
def _dilated_conv_bn_relu_kernel(xp_hbm, w_ref, scale_ref, bias_ref, o_ref,
                                 xbuf, sem, *, rate, pad, TH, W, cin, cout,
                                 n_tiles):
    n = pl.program_id(0)
    t = pl.program_id(1)
    rows = TH + 2 * rate

    def slab_copy(tile, slot):
        row0 = tile * TH + (pad - rate)        # first padded input row needed
        return pltpu.make_async_copy(
            xp_hbm.at[n, pl.ds(row0, rows)], xbuf.at[slot], sem.at[slot])

    # Prime the pipeline at the first row tile of this image.
    @pl.when(t == 0)
    def _():
        slab_copy(t, 0).start()

    slot = t % 2
    slab_copy(t, slot).wait()                  # slab for this tile is ready

    # Prefetch the next tile's slab while we compute on the current one.
    @pl.when(t + 1 < n_tiles)
    def _():
        slab_copy(t + 1, 1 - slot).start()

    xslab = xbuf.at[slot]                      # VMEM ref view, no load yet
    scale = scale_ref[...]                     # (1, Cout) -- loaded once per tile
    bias = bias_ref[...]
    acc = jnp.zeros((TH * W, cout), jnp.float32)
    for dy in range(3):                        # statically unrolled 3x3 taps
        for dx in range(3):
            col0 = (pad - rate) + dx * rate
            patch = xslab[pl.ds(dy * rate, TH), pl.ds(col0, W), :]  # (TH, W, Cin)
            acc = acc + jnp.dot(patch.reshape(TH * W, cin),
                                w_ref[dy * 3 + dx],
                                preferred_element_type=jnp.float32)
    y = jnp.maximum(acc * scale + bias, 0.0)
    o_ref[...] = y.reshape(TH, W, cout).astype(o_ref.dtype)


def _pick_row_tile(H, W, Wp, cin, cout, rate, *, target_rows=512,
                   vmem_budget=18 * 1024 * 1024):
    divisors = [d for d in range(1, H + 1) if H % d == 0]
    th = divisors[-1]
    for d in divisors:
        if d * W >= target_rows:               # enough rows to fill the MXU
            th = d
            break

    def footprint(d):
        slab = 2 * (d + 2 * rate) * Wp * cin * 2    # 2-slot bf16 input slabs
        outb = 2 * d * W * cout * 2                 # double-buffered bf16 out block
        return slab + outb

    while footprint(th) > vmem_budget and th > 1:
        th = max(d for d in divisors if d < th)
    return th


def dilated_conv3x3_bn_relu(xp, w9, scale, bias, *, rate, pad, H, W):
    """xp: (N, H+2*pad, W+2*pad, Cin) bf16 padded once with pad=max(rates);
    w9: (9, Cin, Cout) bf16; scale/bias: (1, Cout) f32."""
    N, Hp, Wp, cin = xp.shape
    cout = w9.shape[-1]
    TH = _pick_row_tile(H, W, Wp, cin, cout, rate)
    n_tiles = H // TH
    kern = functools.partial(_dilated_conv_bn_relu_kernel, rate=rate, pad=pad,
                             TH=TH, W=W, cin=cin, cout=cout, n_tiles=n_tiles)
    return pl.pallas_call(
        kern,
        out_shape=jax.ShapeDtypeStruct((N, H, W, cout), jnp.bfloat16),
        grid=(N, n_tiles),
        in_specs=[
            pl.BlockSpec(memory_space=pl.ANY),                     # stays in HBM
            pl.BlockSpec((9, cin, cout), lambda n, t: (0, 0, 0)),
            pl.BlockSpec((1, cout), lambda n, t: (0, 0)),
            pl.BlockSpec((1, cout), lambda n, t: (0, 0)),
        ],
        out_specs=pl.BlockSpec((None, TH, W, cout), lambda n, t: (n, t, 0, 0)),
        scratch_shapes=[
            pltpu.VMEM((2, TH + 2 * rate, Wp, cin), jnp.bfloat16),
            pltpu.SemaphoreType.DMA((2,)),
        ],
        compiler_params=pltpu.CompilerParams(
            dimension_semantics=("parallel", "arbitrary"),
            vmem_limit_bytes=_VMEM_LIMIT),
    )(xp, w9, scale, bias)


# ----------------------------------------------------------------------------
# Kernel 3: fused projection. Accumulates one (tm, Cout)@(Cout, Cout) dot per
# pixel-wise branch (no concat materialized), adds the image-level pooling
# contribution as a per-image bias, then BN scale/bias + ReLU.
# ----------------------------------------------------------------------------
def _proj_kernel(*refs):
    # refs = (*branch_refs, w_ref, scale_ref, bias_img_ref, o_ref)
    o_ref = refs[-1]
    bias_img_ref = refs[-2]
    scale_ref = refs[-3]
    w_ref = refs[-4]
    branch_refs = refs[:-4]
    acc = jnp.dot(branch_refs[0][...], w_ref[0],
                  preferred_element_type=jnp.float32)
    for i in range(1, len(branch_refs)):
        acc = acc + jnp.dot(branch_refs[i][...], w_ref[i],
                            preferred_element_type=jnp.float32)
    y = acc * scale_ref[...] + bias_img_ref[...]
    o_ref[...] = jnp.maximum(y, 0.0).astype(o_ref.dtype)


def project_fused(branches, w_pix, scale, bias_img, *, tm=512):
    """branches: list of (N, H*W, Cout) bf16; w_pix: (n_branch, Cout, Cout) bf16;
    scale: (1, Cout) f32; bias_img: (N, Cout) f32 (already includes pool term)."""
    N, HW, cout = branches[0].shape
    nb = len(branches)
    if HW <= tm:
        tm = HW
    else:
        tm = max(8, (tm // 8) * 8)
    branch_spec = pl.BlockSpec((None, tm, cout), lambda n, p: (n, p, 0))
    return pl.pallas_call(
        _proj_kernel,
        out_shape=jax.ShapeDtypeStruct((N, HW, cout), jnp.float32),
        grid=(N, pl.cdiv(HW, tm)),
        in_specs=[branch_spec] * nb + [
            pl.BlockSpec((nb, cout, cout), lambda n, p: (0, 0, 0)),
            pl.BlockSpec((1, cout), lambda n, p: (0, 0)),
            pl.BlockSpec((1, cout), lambda n, p: (n, 0)),
        ],
        out_specs=pl.BlockSpec((None, tm, cout), lambda n, p: (n, p, 0)),
        compiler_params=pltpu.CompilerParams(
            dimension_semantics=("parallel", "parallel"),
            vmem_limit_bytes=_VMEM_LIMIT),
    )(*branches, w_pix, scale, bias_img)


# ----------------------------------------------------------------------------
# Parameter handling / full ASPP forward
# ----------------------------------------------------------------------------
def _fold_bn(bn):
    gamma, beta, mean, var = bn
    scale = gamma / jnp.sqrt(var + _BN_EPS)
    bias = beta - mean * scale
    return (scale.reshape(1, -1).astype(jnp.float32),
            bias.reshape(1, -1).astype(jnp.float32))


def aspp_forward(x_nchw, params, rates):
    rates = tuple(rates)
    x = jnp.transpose(x_nchw, (0, 2, 3, 1)).astype(jnp.float32)   # NCHW -> NHWC
    N, H, W, cin = x.shape
    x_bf = x.astype(jnp.bfloat16)
    cout = params["b0"]["w"].shape[1]

    # ---- branch 0: 1x1 conv + BN + ReLU -------------------------------------
    s0, b0 = _fold_bn(params["b0"]["bn"])
    br0 = conv1x1_bn_relu(x_bf.reshape(N * H * W, cin),
                          params["b0"]["w"].astype(jnp.bfloat16),
                          s0, b0, out_dtype=jnp.bfloat16)
    branches = [br0.reshape(N, H * W, cout)]

    # ---- atrous 3x3 branches: pad ONCE with the max rate --------------------
    pad = max(rates)
    xp = jnp.pad(x_bf, ((0, 0), (pad, pad), (pad, pad), (0, 0)))
    for i, r in enumerate(rates):
        p = params[f"a{i}"]
        s, b = _fold_bn(p["bn"])
        w9 = p["w"].reshape(9, cin, cout).astype(jnp.bfloat16)
        y = dilated_conv3x3_bn_relu(xp, w9, s, b, rate=r, pad=pad, H=H, W=W)
        branches.append(y.reshape(N, H * W, cout))

    # ---- image-level pooling branch (tiny; plain JAX, folded into the proj) -
    sp, bp = _fold_bn(params["pool"]["bn"])
    pooled = jnp.mean(x, axis=(1, 2))                              # (N, Cin)
    pool_feat = jnp.maximum((pooled @ params["pool"]["w"]) * sp + bp, 0.0)

    # ---- fused projection ----------------------------------------------------
    # TODO(synk): nn.Dropout(0.5) is treated as eval-mode identity (no RNG mask).
    sj, bj = _fold_bn(params["proj"]["bn"])
    wj = params["proj"]["w"]                                       # (5*Cout, Cout)
    nb = len(branches)
    w_pix = wj[: nb * cout].reshape(nb, cout, cout).astype(jnp.bfloat16)
    w_pool = wj[nb * cout:]                                        # (Cout, Cout)
    bias_img = (pool_feat @ w_pool) * sj + bj                      # (N, Cout)
    out = project_fused(branches, w_pix, sj, bias_img)             # (N, H*W, Cout)
    out = out.reshape(N, H, W, cout)
    return jnp.transpose(out, (0, 3, 1, 2))                        # NHWC -> NCHW


def init_params(key, cin, cout, rates):
    def bn_params(k, c):
        k1, k2, k3, k4 = jax.random.split(k, 4)
        gamma = jax.random.uniform(k1, (c,), jnp.float32, 0.5, 1.5)
        beta = 0.1 * jax.random.normal(k2, (c,), jnp.float32)
        mean = 0.1 * jax.random.normal(k3, (c,), jnp.float32)
        var = jax.random.uniform(k4, (c,), jnp.float32, 0.5, 1.5)
        return (gamma, beta, mean, var)

    keys = iter(jax.random.split(key, 2 * (len(rates) + 3)))
    params = {"b0": {"w": 0.05 * jax.random.normal(next(keys), (cin, cout), jnp.float32),
                     "bn": bn_params(next(keys), cout)}}
    for i, _ in enumerate(rates):
        params[f"a{i}"] = {
            "w": 0.05 * jax.random.normal(next(keys), (3, 3, cin, cout), jnp.float32),
            "bn": bn_params(next(keys), cout)}
    params["pool"] = {"w": 0.05 * jax.random.normal(next(keys), (cin, cout), jnp.float32),
                      "bn": bn_params(next(keys), cout)}
    c_cat = (len(rates) + 2) * cout
    params["proj"] = {"w": 0.05 * jax.random.normal(next(keys), (c_cat, cout), jnp.float32),
                      "bn": bn_params(next(keys), cout)}
    return params


# ----------------------------------------------------------------------------
# Pure-JAX f32 reference (numerical sanity check)
# ----------------------------------------------------------------------------
def reference_aspp(x_nchw, params, rates):
    x = jnp.transpose(x_nchw, (0, 2, 3, 1)).astype(jnp.float32)

    def bn_relu(y, bn):
        g, b, m, v = bn
        return jnp.maximum((y - m) * g / jnp.sqrt(v + _BN_EPS) + b, 0.0)

    def conv1x1(z, w):
        return jnp.einsum("nhwc,cd->nhwd", z, w)

    branches = [bn_relu(conv1x1(x, params["b0"]["w"]), params["b0"]["bn"])]
    for i, r in enumerate(rates):
        p = params[f"a{i}"]
        y = lax.conv_general_dilated(
            x, p["w"], window_strides=(1, 1), padding=[(r, r), (r, r)],
            rhs_dilation=(r, r), dimension_numbers=("NHWC", "HWIO", "NHWC"))
        branches.append(bn_relu(y, p["bn"]))
    p = params["pool"]
    pooled = bn_relu(jnp.mean(x, axis=(1, 2)) @ p["w"], p["bn"])
    branches.append(jnp.broadcast_to(pooled[:, None, None, :],
                                     x.shape[:3] + (pooled.shape[-1],)))
    res = jnp.concatenate(branches, axis=-1)
    p = params["proj"]
    out = bn_relu(conv1x1(res, p["w"]), p["bn"])
    return jnp.transpose(out, (0, 3, 1, 2))


if __name__ == "__main__":
    key = jax.random.PRNGKey(0)
    k_params, k_x = jax.random.split(key)

    N, Cin, H, W = 2, 64, 16, 16
    Cout = 128                 # lane-dense output channels
    rates = (2, 4, 6)          # atrous_rates

    params = init_params(k_params, Cin, Cout, rates)
    x = jax.random.normal(k_x, (N, Cin, H, W), jnp.float32)

    out = jax.block_until_ready(aspp_forward(x, params, rates))
    ref = jax.block_until_ready(reference_aspp(x, params, rates))

    assert out.shape == (N, Cout, H, W), out.shape
    np.testing.assert_allclose(np.asarray(out), np.asarray(ref),
                               rtol=5e-2, atol=5e-2)
    print("KERNEL_OK")
</pallas_src>

<mosaic_0001>
module attributes {stable_mosaic.version = 11 : i64} {
  func.func @_mm_bn_relu_kernel(%arg0: i32, %arg1: memref<512x64xbf16, #tpu.memory_space<vmem>>, %arg2: memref<64x128xbf16, #tpu.memory_space<vmem>>, %arg3: memref<1x128xf32, #tpu.memory_space<vmem>>, %arg4: memref<1x128xf32, #tpu.memory_space<vmem>>, %arg5: memref<512x128xbf16, #tpu.memory_space<vmem>>) attributes {dimension_semantics = [#tpu.dimension_semantics<parallel>], iteration_bounds = array<i64: 1>, scalar_prefetch = 0 : i64, scratch_operands = 0 : i64, tpu.core_type = #tpu.core_type<tc>, window_params = [{transform_indices = @transform_0, window_bounds = array<i64: 512, 64>}, {pipeline_mode = #tpu.pipeline_mode<synchronous>, transform_indices = @transform_1, window_bounds = array<i64: 64, 128>}, {pipeline_mode = #tpu.pipeline_mode<synchronous>, transform_indices = @transform_2, window_bounds = array<i64: 1, 128>}, {pipeline_mode = #tpu.pipeline_mode<synchronous>, transform_indices = @transform_3, window_bounds = array<i64: 1, 128>}, {transform_indices = @transform_4, window_bounds = array<i64: 512, 128>}]} {
    %c0 = arith.constant 0 : index
    %c0_0 = arith.constant 0 : index
    %0 = vector.load %arg1[%c0, %c0_0] : memref<512x64xbf16, #tpu.memory_space<vmem>>, vector<512x64xbf16>
    %c0_1 = arith.constant 0 : index
    %c0_2 = arith.constant 0 : index
    %1 = vector.load %arg2[%c0_1, %c0_2] : memref<64x128xbf16, #tpu.memory_space<vmem>>, vector<64x128xbf16>
    %cst = arith.constant dense<0.000000e+00> : vector<512x128xf32>
    %2 = tpu.matmul %0, %1, %cst {dimension_numbers = #tpu.dot_dimension_numbers<[1], [0], [0], [1], [0, 0, 1, 1], [], []>} : vector<512x64xbf16>, vector<64x128xbf16>, vector<512x128xf32> -> vector<512x128xf32>
    %c0_3 = arith.constant 0 : index
    %c0_4 = arith.constant 0 : index
    %3 = vector.load %arg3[%c0_3, %c0_4] : memref<1x128xf32, #tpu.memory_space<vmem>>, vector<1x128xf32>
    %4 = vector.broadcast %3 : vector<1x128xf32> to vector<512x128xf32>
    %5 = arith.mulf %2, %4 : vector<512x128xf32>
    %c0_5 = arith.constant 0 : index
    %c0_6 = arith.constant 0 : index
    %6 = vector.load %arg4[%c0_5, %c0_6] : memref<1x128xf32, #tpu.memory_space<vmem>>, vector<1x128xf32>
    %7 = vector.broadcast %6 : vector<1x128xf32> to vector<512x128xf32>
    %8 = arith.addf %5, %7 : vector<512x128xf32>
    %cst_7 = arith.constant 0.000000e+00 : f32
    %9 = vector.broadcast %cst_7 : f32 to vector<512x128xf32>
    %10 = arith.maximumf %8, %9 : vector<512x128xf32>
    %11 = arith.truncf %10 : vector<512x128xf32> to vector<512x128xbf16>
    %c0_8 = arith.constant 0 : index
    %c0_9 = arith.constant 0 : index
    %12 = vector.load %arg5[%c0_8, %c0_9] : memref<512x128xbf16, #tpu.memory_space<vmem>>, vector<512x128xbf16>
    tpu.vector_store %arg5[%c0_8, %c0_9], %11 {strides = array<i32>} : memref<512x128xbf16, #tpu.memory_space<vmem>>, vector<512x128xbf16>,
    return
  }
  func.func @transform_0(%arg0: i32) -> (i32, i32) {
    %c0_i32 = arith.constant 0 : i32
    %c0_i32_0 = arith.constant 0 : i32
    return %arg0, %c0_i32 : i32, i32
  }
  func.func @transform_1(%arg0: i32) -> (i32, i32) {
    %c0_i32 = arith.constant 0 : i32
    %c0_i32_0 = arith.constant 0 : i32
    %c0_i32_1 = arith.constant 0 : i32
    return %c0_i32, %c0_i32_0 : i32, i32
  }
  func.func @transform_2(%arg0: i32) -> (i32, i32) {
    %c0_i32 = arith.constant 0 : i32
    %c0_i32_0 = arith.constant 0 : i32
    %c0_i32_1 = arith.constant 0 : i32
    return %c0_i32, %c0_i32_0 : i32, i32
  }
  func.func @transform_3(%arg0: i32) -> (i32, i32) {
    %c0_i32 = arith.constant 0 : i32
    %c0_i32_0 = arith.constant 0 : i32
    %c0_i32_1 = arith.constant 0 : i32
    return %c0_i32, %c0_i32_0 : i32, i32
  }
  func.func @transform_4(%arg0: i32) -> (i32, i32) {
    %c0_i32 = arith.constant 0 : i32
    %c0_i32_0 = arith.constant 0 : i32
    return %arg0, %c0_i32 : i32, i32
  }
}

</mosaic_0001>

<llo_original>
// kernel: tpu_custom_call.1
$region0: #{tpu_custom_call.1}
  #allocation0 [shape = 'u32[]', space=smem, size = 0x4, offset = 0x4, fixed_abs, tag = 'smem constant byte address 0x4 - core index']
  #allocation1 [shape = 'u32[72,128]{1,0:T(1,128)}', space=vmem, size = 0x9000, scoped, tag = 'internal scratch']
  %s0 = inlined_call_operand.vmem [shape: bf16[512,64], index: 0, kind: input, shape index: {}]
  %s1 = inlined_call_operand.vmem [shape: bf16[64,128], index: 1, kind: input, shape index: {}]
  %s2 = inlined_call_operand.vmem [shape: f32[1,128], index: 2, kind: input, shape index: {}]
  %s3 = inlined_call_operand.vmem [shape: f32[1,128], index: 3, kind: input, shape index: {}]
  %s4 = inlined_call_operand.hbm [shape: bf16[512,128], index: 4, kind: output, shape index: {}]
  %s5 = sld [smem:[#allocation0]]
  $region26: #{tpu_custom_call.1} parent=0
    _
  %s7 = ssub.s32 1, %s5
  %s8 = scalar_select 0, %s7, %s5
  $region1: #{tpu_custom_call.1} parent=0
    #allocation2 [shape = 'u8[131072]{0}', space=vmem, size = 0x20000, scoped, tag = 'output window, operand 0, single buffered']
    #allocation3 [shape = 's32[1]{0}', space=sflag, size = 0x4, scoped, tag = 'scoped memory for tpu_custom_call.1']
    %9 = vsyncpa [#allocation3], 0
    // Predicated region
    $region2: #{tpu_custom_call.1} parent=1 // pred_check
      _
    $region3: #{tpu_custom_call.1} parent=1 // pred_check_branch
      %11 = sbr.rel (0) target = $region5
    $region4: #{tpu_custom_call.1} parent=1 // pred_region
      _
    $region5: #{tpu_custom_call.1} parent=1 // pred_fallthru
      _
    // Predicated region
    $region6: #{tpu_custom_call.1} parent=1 // pred_check
      _
    $region7: #{tpu_custom_call.1} parent=1 // pred_check_branch
      %13 = sbr.rel (0) target = $region9
    $region8: #{tpu_custom_call.1} parent=1 // pred_region
      _
    $region9: #{tpu_custom_call.1} parent=1 // pred_fallthru
      _
    // Predicated region
    $region10: #{tpu_custom_call.1} parent=1 // pred_check
      _
    $region11: #{tpu_custom_call.1} parent=1 // pred_check_branch
      %15 = sbr.rel (0) target = $region13
    $region12: #{tpu_custom_call.1} parent=1 // pred_region
      _
    $region13: #{tpu_custom_call.1} parent=1 // pred_fallthru
      _
    // Predicated region
    $region14: #{tpu_custom_call.1} parent=1 // pred_check
      _
    $region15: #{tpu_custom_call.1} parent=1 // pred_check_branch
      %17 = sbr.rel (0) target = $region17
    $region16: #{tpu_custom_call.1} parent=1 // pred_region
      _
    $region17: #{tpu_custom_call.1} parent=1 // pred_fallthru
      _
    %v19 = vld [vmem:[%s0] sm:$0xf]
    %v20 = vld [vmem:[%s0 + $0x4] sm:$0xf]
    %v21 = vld [vmem:[%s0 + $0x8] sm:$0xf]
    %v22 = vld [vmem:[%s0 + $0xc] sm:$0xf]
    %v23 = vld [vmem:[%s0 + $0x10] sm:$0xf]
    %v24 = vld [vmem:[%s0 + $0x14] sm:$0xf]
    %v25 = vld [vmem:[%s0 + $0x18] sm:$0xf]
    %v26 = vld [vmem:[%s0 + $0x1c] sm:$0xf]
    %v27 = vld [vmem:[%s0 + $0x20] sm:$0xf]
    %v28 = vld [vmem:[%s0 + $0x24] sm:$0xf]
    %v29 = vld [vmem:[%s0 + $0x28] sm:$0xf]
    %v30 = vld [vmem:[%s0 + $0x2c] sm:$0xf]
    %v31 = vld [vmem:[%s0 + $0x30] sm:$0xf]
    %v32 = vld [vmem:[%s0 + $0x34] sm:$0xf]
    %v33 = vld [vmem:[%s0 + $0x38] sm:$0xf]
    %v34 = vld [vmem:[%s0 + $0x3c] sm:$0xf]
    %v35 = vld [vmem:[%s0 + $0x40] sm:$0xf]
    %v36 = vld [vmem:[%s0 + $0x44] sm:$0xf]
    %v37 = vld [vmem:[%s0 + $0x48] sm:$0xf]
    %v38 = vld [vmem:[%s0 + $0x4c] sm:$0xf]
    %v39 = vld [vmem:[%s0 + $0x50] sm:$0xf]
    %v40 = vld [vmem:[%s0 + $0x54] sm:$0xf]
    %v41 = vld [vmem:[%s0 + $0x58] sm:$0xf]
    %v42 = vld [vmem:[%s0 + $0x5c] sm:$0xf]
    %v43 = vld [vmem:[%s0 + $0x60] sm:$0xf]
    %v44 = vld [vmem:[%s0 + $0x64] sm:$0xf]
    %v45 = vld [vmem:[%s0 + $0x68] sm:$0xf]
    %v46 = vld [vmem:[%s0 + $0x6c] sm:$0xf]
    %v47 = vld [vmem:[%s0 + $0x70] sm:$0xf]
    %v48 = vld [vmem:[%s0 + $0x74] sm:$0xf]
    %v49 = vld [vmem:[%s0 + $0x78] sm:$0xf]
    %v50 = vld [vmem:[%s0 + $0x7c] sm:$0xf]
    %v51 = vld [vmem:[%s0 + $0x80] sm:$0xf]
    %v52 = vld [vmem:[%s0 + $0x84] sm:$0xf]
    %v53 = vld [vmem:[%s0 + $0x88] sm:$0xf]
    %v54 = vld [vmem:[%s0 + $0x8c] sm:$0xf]
    %v55 = vld [vmem:[%s0 + $0x90] sm:$0xf]
    %v56 = vld [vmem:[%s0 + $0x94] sm:$0xf]
    %v57 = vld [vmem:[%s0 + $0x98] sm:$0xf]
    %v58 = vld [vmem:[%s0 + $0x9c] sm:$0xf]
    %v59 = vld [vmem:[%s0 + $0xa0] sm:$0xf]
    %v60 = vld [vmem:[%s0 + $0xa4] sm:$0xf]
    %v61 = vld [vmem:[%s0 + $0xa8] sm:$0xf]
    %v62 = vld [vmem:[%s0 + $0xac] sm:$0xf]
    %v63 = vld [vmem:[%s0 + $0xb0] sm:$0xf]
    %v64 = vld [vmem:[%s0 + $0xb4] sm:$0xf]
    %v65 = vld [vmem:[%s0 + $0xb8] sm:$0xf]
    %v66 = vld [vmem:[%s0 + $0xbc] sm:$0xf]
    %v67 = vld [vmem:[%s0 + $0xc0] sm:$0xf]
    %v68 = vld [vmem:[%s0 + $0xc4] sm:$0xf]
    %v69 = vld [vmem:[%s0 + $0xc8] sm:$0xf]
    %v70 = vld [vmem:[%s0 + $0xcc] sm:$0xf]
    %v71 = vld [vmem:[%s0 + $0xd0] sm:$0xf]
    %v72 = vld [vmem:[%s0 + $0xd4] sm:$0xf]
    %v73 = vld [vmem:[%s0 + $0xd8] sm:$0xf]
    %v74 = vld [vmem:[%s0 + $0xdc] sm:$0xf]
    %v75 = vld [vmem:[%s0 + $0xe0] sm:$0xf]
    %v76 = vld [vmem:[%s0 + $0xe4] sm:$0xf]
    %v77 = vld [vmem:[%s0 + $0xe8] sm:$0xf]
    %v78 = vld [vmem:[%s0 + $0xec] sm:$0xf]
    %v79 = vld [vmem:[%s0 + $0xf0] sm:$0xf]
    %v80 = vld [vmem:[%s0 + $0xf4] sm:$0xf]
    %v81 = vld [vmem:[%s0 + $0xf8] sm:$0xf]
    %v82 = vld [vmem:[%s0 + $0xfc] sm:$0xf]
    %v83 = vld [vmem:[%s1] sm:$0xf]
    %v84 = vld [vmem:[%s1 + $0x4] sm:$0xf]
    %v85 = vld [vmem:[%s1 + $0x8] sm:$0xf]
    %v86 = vld [vmem:[%s1 + $0xc] sm:$0xf]
    %v87 = vld [vmem:[%s1 + $0x10] sm:$0xf]
    %v88 = vld [vmem:[%s1 + $0x14] sm:$0xf]
    %v89 = vld [vmem:[%s1 + $0x18] sm:$0xf]
    %v90 = vld [vmem:[%s1 + $0x1c] sm:$0xf]
    %v155 = vunpack.c.l.b16 %v19
    %v156 = vunpack.c.l.b16 %v20
    %v157 = vunpack.c.l.b16 %v21
    %v158 = vunpack.c.l.b16 %v22
    %v159 = vunpack.c.l.b16 %v23
    %v160 = vunpack.c.l.b16 %v24
    %v161 = vunpack.c.l.b16 %v25
    %v162 = vunpack.c.l.b16 %v26
    %v163 = vunpack.c.l.b16 %v27
    %v164 = vunpack.c.l.b16 %v28
    %v165 = vunpack.c.l.b16 %v29
    %v166 = vunpack.c.l.b16 %v30
    %v167 = vunpack.c.l.b16 %v31
    %v168 = vunpack.c.l.b16 %v32
    %v169 = vunpack.c.l.b16 %v33
    %v170 = vunpack.c.l.b16 %v34
    %v171 = vunpack.c.l.b16 %v35
    %v172 = vunpack.c.l.b16 %v36
    %v173 = vunpack.c.l.b16 %v37
    %v174 = vunpack.c.l.b16 %v38
    %v175 = vunpack.c.l.b16 %v39
    %v176 = vunpack.c.l.b16 %v40
    %v177 = vunpack.c.l.b16 %v41
    %v178 = vunpack.c.l.b16 %v42
    %v179 = vunpack.c.l.b16 %v43
    %v180 = vunpack.c.l.b16 %v44
    %v181 = vunpack.c.l.b16 %v45
    %v182 = vunpack.c.l.b16 %v46
    %v183 = vunpack.c.l.b16 %v47
    %v184 = vunpack.c.l.b16 %v48
    %v185 = vunpack.c.l.b16 %v49
    %v186 = vunpack.c.l.b16 %v50
    %v187 = vunpack.c.l.b16 %v51
    %v188 = vunpack.c.l.b16 %v52
    %v189 = vunpack.c.l.b16 %v53
    %v190 = vunpack.c.l.b16 %v54
    %v191 = vunpack.c.l.b16 %v55
    %v192 = vunpack.c.l.b16 %v56
    %v193 = vunpack.c.l.b16 %v57
    %v194 = vunpack.c.l.b16 %v58
    %v195 = vunpack.c.l.b16 %v59
    %v196 = vunpack.c.l.b16 %v60
    %v197 = vunpack.c.l.b16 %v61
    %v198 = vunpack.c.l.b16 %v62
    %v199 = vunpack.c.l.b16 %v63
    %v200 = vunpack.c.l.b16 %v64
    %v201 = vunpack.c.l.b16 %v65
    %v202 = vunpack.c.l.b16 %v66
    %v203 = vunpack.c.l.b16 %v67
    %v204 = vunpack.c.l.b16 %v68
    %v205 = vunpack.c.l.b16 %v69
    %v206 = vunpack.c.l.b16 %v70
    %v207 = vunpack.c.l.b16 %v71
    %v208 = vunpack.c.l.b16 %v72
    %v209 = vunpack.c.l.b16 %v73
    %v210 = vunpack.c.l.b16 %v74
    %v211 = vunpack.c.l.b16 %v75
    %v212 = vunpack.c.l.b16 %v76
    %v213 = vunpack.c.l.b16 %v77
    %v214 = vunpack.c.l.b16 %v78
    %v215 = vunpack.c.l.b16 %v79
    %v216 = vunpack.c.l.b16 %v80
    %v217 = vunpack.c.l.b16 %v81
    %v218 = vunpack.c.l.b16 %v82
    %v219 = vpack.c.b16 %v156, %v155
    %v220 = vpack.c.b16 %v158, %v157
    %v221 = vpack.c.b16 %v160, %v159
    %v222 = vpack.c.b16 %v162, %v161
    %v223 = vpack.c.b16 %v164, %v163
    %v224 = vpack.c.b16 %v166, %v165
    %v225 = vpack.c.b16 %v168, %v167
    %v226 = vpack.c.b16 %v170, %v169
    %v227 = vpack.c.b16 %v172, %v171
    %v228 = vpack.c.b16 %v174, %v173
    %v229 = vpack.c.b16 %v176, %v175
    %v230 = vpack.c.b16 %v178, %v177
    %v231 = vpack.c.b16 %v180, %v179
    %v232 = vpack.c.b16 %v182, %v181
    %v233 = vpack.c.b16 %v184, %v183
    %v234 = vpack.c.b16 %v186, %v185
    %v235 = vpack.c.b16 %v188, %v187
    %v236 = vpack.c.b16 %v190, %v189
    %v237 = vpack.c.b16 %v192, %v191
    %v238 = vpack.c.b16 %v194, %v193
    %v239 = vpack.c.b16 %v196, %v195
    %v240 = vpack.c.b16 %v198, %v197
    %v241 = vpack.c.b16 %v200, %v199
    %v242 = vpack.c.b16 %v202, %v201
    %v243 = vpack.c.b16 %v204, %v203
    %v244 = vpack.c.b16 %v206, %v205
    %v245 = vpack.c.b16 %v208, %v207
    %v246 = vpack.c.b16 %v210, %v209
    %v247 = vpack.c.b16 %v212, %v211
    %v248 = vpack.c.b16 %v214, %v213
    %v249 = vpack.c.b16 %v216, %v215
    %v250 = vpack.c.b16 %v218, %v217
    %v259 = vunpack.c.l.b16 %v83
    %v260 = vunpack.c.l.b16 %v84
    %v261 = vunpack.c.l.b16 %v85
    %v262 = vunpack.c.l.b16 %v86
    %v263 = vunpack.c.l.b16 %v87
    %v264 = vunpack.c.l.b16 %v88
    %v265 = vunpack.c.l.b16 %v89
    %v266 = vunpack.c.l.b16 %v90
    %v267 = vpack.c.b16 %v260, %v259
    %v268 = vpack.c.b16 %v262, %v261
    %v269 = vpack.c.b16 %v264, %v263
    %v270 = vpack.c.b16 %v266, %v265
    %vm275 = vcmask 523264
    %v277 = vsel %vm275, %v219, 0
    %v280 = vsel %vm275, %v220, 0
    %v283 = vsel %vm275, %v221, 0
    %v286 = vsel %vm275, %v222, 0
    %v289 = vsel %vm275, %v223, 0
    %v292 = vsel %vm275, %v224, 0
    %v295 = vsel %vm275, %v225, 0
    %v298 = vsel %vm275, %v226, 0
    %v301 = vsel %vm275, %v227, 0
    %v304 = vsel %vm275, %v228, 0
    %v307 = vsel %vm275, %v229, 0
    %v310 = vsel %vm275, %v230, 0
    %v313 = vsel %vm275, %v231, 0
    %v316 = vsel %vm275, %v232, 0
    %v319 = vsel %vm275, %v233, 0
    %v322 = vsel %vm275, %v234, 0
    %v325 = vsel %vm275, %v235, 0
    %v328 = vsel %vm275, %v236, 0
    %v331 = vsel %vm275, %v237, 0
    %v334 = vsel %vm275, %v238, 0
    %v337 = vsel %vm275, %v239, 0
    %v340 = vsel %vm275, %v240, 0
    %v343 = vsel %vm275, %v241, 0
    %v346 = vsel %vm275, %v242, 0
    %v349 = vsel %vm275, %v243, 0
    %v352 = vsel %vm275, %v244, 0
    %v355 = vsel %vm275, %v245, 0
    %v358 = vsel %vm275, %v246, 0
    %v361 = vsel %vm275, %v247, 0
    %v364 = vsel %vm275, %v248, 0
    %v367 = vsel %vm275, %v249, 0
    %v370 = vsel %vm275, %v250, 0
    %372 = vmatpush.bf16.msra.mxu0 0
    %373 = vmatpush.bf16.msra.mxu0 0
    %374 = vmatpush.bf16.msra.mxu0 0
    %375 = vmatpush.bf16.msra.mxu0 0
    %376 = vmatpush.bf16.msra.mxu0 %v270
    %377 = vmatpush.bf16.msra.mxu0 %v269
    %378 = vmatpush.bf16.msra.mxu0 %v268
    %379 = vmatpush.bf16.msra.mxu0 %v267
    %380 = vmatmul.bf16.gmra.mxu0 %v277
    %v381 = vpop.f32.mrf.mxu0
    %v382 = vadd.f32 0.0, %v381
    %v383 = vpop.f32.mrf.mxu0
    %v384 = vadd.f32 0.0, %v383
    %385 = vmatmul.bf16.gmra.mxu0 %v280
    %v386 = vpop.f32.mrf.mxu0
    %v387 = vadd.f32 0.0, %v386
    %v388 = vpop.f32.mrf.mxu0
    %v389 = vadd.f32 0.0, %v388
    %390 = vmatmul.bf16.gmra.mxu0 %v283
    %v391 = vpop.f32.mrf.mxu0
    %v392 = vadd.f32 0.0, %v391
    %v393 = vpop.f32.mrf.mxu0
    %v394 = vadd.f32 0.0, %v393
    %395 = vmatmul.bf16.gmra.mxu0 %v286
    %v396 = vpop.f32.mrf.mxu0
    %v397 = vadd.f32 0.0, %v396
    %v398 = vpop.f32.mrf.mxu0
    %v399 = vadd.f32 0.0, %v398
    %400 = vmatmul.bf16.gmra.mxu0 %v289
    %v401 = vpop.f32.mrf.mxu0
    %v402 = vadd.f32 0.0, %v401
    %v403 = vpop.f32.mrf.mxu0
    %v404 = vadd.f32 0.0, %v403
    %405 = vmatmul.bf16.gmra.mxu0 %v292
    %v406 = vpop.f32.mrf.mxu0
    %v407 = vadd.f32 0.0, %v406
    %v408 = vpop.f32.mrf.mxu0
    %v409 = vadd.f32 0.0, %v408
    %410 = vmatmul.bf16.gmra.mxu0 %v295
    %v411 = vpop.f32.mrf.mxu0
    %v412 = vadd.f32 0.0, %v411
    %v413 = vpop.f32.mrf.mxu0
    %v414 = vadd.f32 0.0, %v413
    %415 = vmatmul.bf16.gmra.mxu0 %v298
    %v416 = vpop.f32.mrf.mxu0
    %v417 = vadd.f32 0.0, %v416
    %v418 = vpop.f32.mrf.mxu0
    %v419 = vadd.f32 0.0, %v418
    %420 = vmatmul.bf16.gmra.mxu0 %v301
    %v421 = vpop.f32.mrf.mxu0
    %v422 = vadd.f32 0.0, %v421
    %v423 = vpop.f32.mrf.mxu0
    %v424 = vadd.f32 0.0, %v423
    %425 = vmatmul.bf16.gmra.mxu0 %v304
    %v426 = vpop.f32.mrf.mxu0
    %v427 = vadd.f32 0.0, %v426
    %v428 = vpop.f32.mrf.mxu0
    %v429 = vadd.f32 0.0, %v428
    %430 = vmatmul.bf16.gmra.mxu0 %v307
    %v431 = vpop.f32.mrf.mxu0
    %v432 = vadd.f32 0.0, %v431
    %v433 = vpop.f32.mrf.mxu0
    %v434 = vadd.f32 0.0, %v433
    %435 = vmatmul.bf16.gmra.mxu0 %v310
    %v436 = vpop.f32.mrf.mxu0
    %v437 = vadd.f32 0.0, %v436
    %v438 = vpop.f32.mrf.mxu0
    %v439 = vadd.f32 0.0, %v438
    %440 = vmatmul.bf16.gmra.mxu0 %v313
    %v441 = vpop.f32.mrf.mxu0
    %v442 = vadd.f32 0.0, %v441
    %v443 = vpop.f32.mrf.mxu0
    %v444 = vadd.f32 0.0, %v443
    %445 = vmatmul.bf16.gmra.mxu0 %v316
    %v446 = vpop.f32.mrf.mxu0
    %v447 = vadd.f32 0.0, %v446
    %v448 = vpop.f32.mrf.mxu0
    %v449 = vadd.f32 0.0, %v448
    %450 = vmatmul.bf16.gmra.mxu0 %v319
    %v451 = vpop.f32.mrf.mxu0
    %v452 = vadd.f32 0.0, %v451
    %v453 = vpop.f32.mrf.mxu0
    %v454 = vadd.f32 0.0, %v453
    %455 = vmatmul.bf16.gmra.mxu0 %v322
    %v456 = vpop.f32.mrf.mxu0
    %v457 = vadd.f32 0.0, %v456
    %v458 = vpop.f32.mrf.mxu0
    %v459 = vadd.f32 0.0, %v458
    %460 = vmatmul.bf16.gmra.mxu0 %v325
    %v461 = vpop.f32.mrf.mxu0
    %v462 = vadd.f32 0.0, %v461
    %v463 = vpop.f32.mrf.mxu0
    %v464 = vadd.f32 0.0, %v463
    %465 = vmatmul.bf16.gmra.mxu0 %v328
    %v466 = vpop.f32.mrf.mxu0
    %v467 = vadd.f32 0.0, %v466
    %v468 = vpop.f32.mrf.mxu0
    %v469 = vadd.f32 0.0, %v468
    %470 = vmatmul.bf16.gmra.mxu0 %v331
    %v471 = vpop.f32.mrf.mxu0
    %v472 = vadd.f32 0.0, %v471
    %v473 = vpop.f32.mrf.mxu0
    %v474 = vadd.f32 0.0, %v473
    %475 = vmatmul.bf16.gmra.mxu0 %v334
    %v476 = vpop.f32.mrf.mxu0
    %v477 = vadd.f32 0.0, %v476
    %v478 = vpop.f32.mrf.mxu0
    %v479 = vadd.f32 0.0, %v478
    %480 = vmatmul.bf16.gmra.mxu0 %v337
    %v481 = vpop.f32.mrf.mxu0
    %v482 = vadd.f32 0.0, %v481
    %v483 = vpop.f32.mrf.mxu0
    %v484 = vadd.f32 0.0, %v483
    %485 = vmatmul.bf16.gmra.mxu0 %v340
    %v486 = vpop.f32.mrf.mxu0
    %v487 = vadd.f32 0.0, %v486
    %v488 = vpop.f32.mrf.mxu0
    %v489 = vadd.f32 0.0, %v488
    %490 = vmatmul.bf16.gmra.mxu0 %v343
    %v491 = vpop.f32.mrf.mxu0
    %v492 = vadd.f32 0.0, %v491
    %v493 = vpop.f32.mrf.mxu0
    %v494 = vadd.f32 0.0, %v493
    %495 = vmatmul.bf16.gmra.mxu0 %v346
    %v496 = vpop.f32.mrf.mxu0
    %v497 = vadd.f32 0.0, %v496
    %v498 = vpop.f32.mrf.mxu0
    %v499 = vadd.f32 0.0, %v498
    %500 = vmatmul.bf16.gmra.mxu0 %v349
    %v501 = vpop.f32.mrf.mxu0
    %v502 = vadd.f32 0.0, %v501
    %v503 = vpop.f32.mrf.mxu0
    %v504 = vadd.f32 0.0, %v503
    %505 = vmatmul.bf16.gmra.mxu0 %v352
    %v506 = vpop.f32.mrf.mxu0
    %v507 = vadd.f32 0.0, %v506
    %v508 = vpop.f32.mrf.mxu0
    %v509 = vadd.f32 0.0, %v508
    %510 = vmatmul.bf16.gmra.mxu0 %v355
    %v511 = vpop.f32.mrf.mxu0
    %v512 = vadd.f32 0.0, %v511
    %v513 = vpop.f32.mrf.mxu0
    %v514 = vadd.f32 0.0, %v513
    %515 = vmatmul.bf16.gmra.mxu0 %v358
    %v516 = vpop.f32.mrf.mxu0
    %v517 = vadd.f32 0.0, %v516
    %v518 = vpop.f32.mrf.mxu0
    %v519 = vadd.f32 0.0, %v518
    %520 = vmatmul.bf16.gmra.mxu0 %v361
    %v521 = vpop.f32.mrf.mxu0
    %v522 = vadd.f32 0.0, %v521
    %v523 = vpop.f32.mrf.mxu0
    %v524 = vadd.f32 0.0, %v523
    %525 = vmatmul.bf16.gmra.mxu0 %v364
    %v526 = vpop.f32.mrf.mxu0
    %v527 = vadd.f32 0.0, %v526
    %v528 = vpop.f32.mrf.mxu0
    %v529 = vadd.f32 0.0, %v528
    %530 = vmatmul.bf16.gmra.mxu0 %v367
    %v531 = vpop.f32.mrf.mxu0
    %v532 = vadd.f32 0.0, %v531
    %v533 = vpop.f32.mrf.mxu0
    %v534 = vadd.f32 0.0, %v533
    %535 = vmatmul.bf16.gmra.mxu0 %v370
    %v536 = vpop.f32.mrf.mxu0
    %v537 = vadd.f32 0.0, %v536
    %v538 = vpop.f32.mrf.mxu0
    %v539 = vadd.f32 0.0, %v538
    %540 = vdwg.mxu0
    %v541 = vld [vmem:[%s2] sm:$0x1]
    %v543 = vperm.slane %v541, 0
    %v545 = vmul.f32 %v382, %v543
    %v546 = vmul.f32 %v384, %v543
    %v547 = vmul.f32 %v387, %v543
    %v548 = vmul.f32 %v389, %v543
    %v549 = vmul.f32 %v392, %v543
    %v550 = vmul.f32 %v394, %v543
    %v551 = vmul.f32 %v397, %v543
    %v552 = vmul.f32 %v399, %v543
    %v553 = vmul.f32 %v402, %v543
    %v554 = vmul.f32 %v404, %v543
    %v555 = vmul.f32 %v407, %v543
    %v556 = vmul.f32 %v409, %v543
    %v557 = vmul.f32 %v412, %v543
    %v558 = vmul.f32 %v414, %v543
    %v559 = vmul.f32 %v417, %v543
    %v560 = vmul.f32 %v419, %v543
    %v561 = vmul.f32 %v422, %v543
    %v562 = vmul.f32 %v424, %v543
    %v563 = vmul.f32 %v427, %v543
    %v564 = vmul.f32 %v429, %v543
    %v565 = vmul.f32 %v432, %v543
    %v566 = vmul.f32 %v434, %v543
    %v567 = vmul.f32 %v437, %v543
    %v568 = vmul.f32 %v439, %v543
    %v569 = vmul.f32 %v442, %v543
    %v570 = vmul.f32 %v444, %v543
    %v571 = vmul.f32 %v447, %v543
    %v572 = vmul.f32 %v449, %v543
    %v573 = vmul.f32 %v452, %v543
    %v574 = vmul.f32 %v454, %v543
    %v575 = vmul.f32 %v457, %v543
    %v576 = vmul.f32 %v459, %v543
    %v577 = vmul.f32 %v462, %v543
    %v578 = vmul.f32 %v464, %v543
    %v579 = vmul.f32 %v467, %v543
    %v580 = vmul.f32 %v469, %v543
    %v581 = vmul.f32 %v472, %v543
    %v582 = vmul.f32 %v474, %v543
    %v583 = vmul.f32 %v477, %v543
    %v584 = vmul.f32 %v479, %v543
    %v585 = vmul.f32 %v482, %v543
    %v586 = vmul.f32 %v484, %v543
    %v587 = vmul.f32 %v487, %v543
    %v588 = vmul.f32 %v489, %v543
    %v589 = vmul.f32 %v492, %v543
    %v590 = vmul.f32 %v494, %v543
    %v591 = vmul.f32 %v497, %v543
    %v592 = vmul.f32 %v499, %v543
    %v593 = vmul.f32 %v502, %v543
    %v594 = vmul.f32 %v504, %v543
    %v595 = vmul.f32 %v507, %v543
    %v596 = vmul.f32 %v509, %v543
    %v597 = vmul.f32 %v512, %v543
    %v598 = vmul.f32 %v514, %v543
    %v599 = vmul.f32 %v517, %v543
    %v600 = vmul.f32 %v519, %v543
    %v601 = vmul.f32 %v522, %v543
    %v602 = vmul.f32 %v524, %v543
    %v603 = vmul.f32 %v527, %v543
    %v604 = vmul.f32 %v529, %v543
    %v605 = vmul.f32 %v532, %v543
    %v606 = vmul.f32 %v534, %v543
    %v607 = vmul.f32 %v537, %v543
    %v608 = vmul.f32 %v539, %v543
    %v609 = vld [vmem:[%s3] sm:$0x1]
    %v611 = vperm.slane %v609, 0
    %v613 = vadd.f32 %v545, %v611
    %v614 = vadd.f32 %v546, %v611
    %v615 = vadd.f32 %v547, %v611
    %v616 = vadd.f32 %v548, %v611
    %v617 = vadd.f32 %v549, %v611
    %v618 = vadd.f32 %v550, %v611
    %v619 = vadd.f32 %v551, %v611
    %v620 = vadd.f32 %v552, %v611
    %v621 = vadd.f32 %v553, %v611
    %v622 = vadd.f32 %v554, %v611
    %v623 = vadd.f32 %v555, %v611
    %v624 = vadd.f32 %v556, %v611
    %v625 = vadd.f32 %v557, %v611
    %v626 = vadd.f32 %v558, %v611
    %v627 = vadd.f32 %v559, %v611
    %v628 = vadd.f32 %v560, %v611
    %v629 = vadd.f32 %v561, %v611
    %v630 = vadd.f32 %v562, %v611
    %v631 = vadd.f32 %v563, %v611
    %v632 = vadd.f32 %v564, %v611
    %v633 = vadd.f32 %v565, %v611
    %v634 = vadd.f32 %v566, %v611
    %v635 = vadd.f32 %v567, %v611
    %v636 = vadd.f32 %v568, %v611
    %v637 = vadd.f32 %v569, %v611
    %v638 = vadd.f32 %v570, %v611
    %v639 = vadd.f32 %v571, %v611
    %v640 = vadd.f32 %v572, %v611
    %v641 = vadd.f32 %v573, %v611
    %v642 = vadd.f32 %v574, %v611
    %v643 = vadd.f32 %v575, %v611
    %v644 = vadd.f32 %v576, %v611
    %v645 = vadd.f32 %v577, %v611
    %v646 = vadd.f32 %v578, %v611
    %v647 = vadd.f32 %v579, %v611
    %v648 = vadd.f32 %v580, %v611
    %v649 = vadd.f32 %v581, %v611
    %v650 = vadd.f32 %v582, %v611
    %v651 = vadd.f32 %v583, %v611
    %v652 = vadd.f32 %v584, %v611
    %v653 = vadd.f32 %v585, %v611
    %v654 = vadd.f32 %v586, %v611
    %v655 = vadd.f32 %v587, %v611
    %v656 = vadd.f32 %v588, %v611
    %v657 = vadd.f32 %v589, %v611
    %v658 = vadd.f32 %v590, %v611
    %v659 = vadd.f32 %v591, %v611
    %v660 = vadd.f32 %v592, %v611
    %v661 = vadd.f32 %v593, %v611
    %v662 = vadd.f32 %v594, %v611
    %v663 = vadd.f32 %v595, %v611
    %v664 = vadd.f32 %v596, %v611
    %v665 = vadd.f32 %v597, %v611
    %v666 = vadd.f32 %v598, %v611
    %v667 = vadd.f32 %v599, %v611
    %v668 = vadd.f32 %v600, %v611
    %v669 = vadd.f32 %v601, %v611
    %v670 = vadd.f32 %v602, %v611
    %v671 = vadd.f32 %v603, %v611
    %v672 = vadd.f32 %v604, %v611
    %v673 = vadd.f32 %v605, %v611
    %v674 = vadd.f32 %v606, %v611
    %v675 = vadd.f32 %v607, %v611
    %v676 = vadd.f32 %v608, %v611
    %v677 = vmax.f32 %v613, 0.0
    %v678 = vmax.f32 %v614, 0.0
    %v679 = vmax.f32 %v615, 0.0
    %v680 = vmax.f32 %v616, 0.0
    %v681 = vmax.f32 %v617, 0.0
    %v682 = vmax.f32 %v618, 0.0
    %v683 = vmax.f32 %v619, 0.0
    %v684 = vmax.f32 %v620, 0.0
    %v685 = vmax.f32 %v621, 0.0
    %v686 = vmax.f32 %v622, 0.0
    %v687 = vmax.f32 %v623, 0.0
    %v688 = vmax.f32 %v624, 0.0
    %v689 = vmax.f32 %v625, 0.0
    %v690 = vmax.f32 %v626, 0.0
    %v691 = vmax.f32 %v627, 0.0
    %v692 = vmax.f32 %v628, 0.0
    %v693 = vmax.f32 %v629, 0.0
    %v694 = vmax.f32 %v630, 0.0
    %v695 = vmax.f32 %v631, 0.0
    %v696 = vmax.f32 %v632, 0.0
    %v697 = vmax.f32 %v633, 0.0
    %v698 = vmax.f32 %v634, 0.0
    %v699 = vmax.f32 %v635, 0.0
    %v700 = vmax.f32 %v636, 0.0
    %v701 = vmax.f32 %v637, 0.0
    %v702 = vmax.f32 %v638, 0.0
    %v703 = vmax.f32 %v639, 0.0
    %v704 = vmax.f32 %v640, 0.0
    %v705 = vmax.f32 %v641, 0.0
    %v706 = vmax.f32 %v642, 0.0
    %v707 = vmax.f32 %v643, 0.0
    %v708 = vmax.f32 %v644, 0.0
    %v709 = vmax.f32 %v645, 0.0
    %v710 = vmax.f32 %v646, 0.0
    %v711 = vmax.f32 %v647, 0.0
    %v712 = vmax.f32 %v648, 0.0
    %v713 = vmax.f32 %v649, 0.0
    %v714 = vmax.f32 %v650, 0.0
    %v715 = vmax.f32 %v651, 0.0
    %v716 = vmax.f32 %v652, 0.0
    %v717 = vmax.f32 %v653, 0.0
    %v718 = vmax.f32 %v654, 0.0
    %v719 = vmax.f32 %v655, 0.0
    %v720 = vmax.f32 %v656, 0.0
    %v721 = vmax.f32 %v657, 0.0
    %v722 = vmax.f32 %v658, 0.0
    %v723 = vmax.f32 %v659, 0.0
    %v724 = vmax.f32 %v660, 0.0
    %v725 = vmax.f32 %v661, 0.0
    %v726 = vmax.f32 %v662, 0.0
    %v727 = vmax.f32 %v663, 0.0
    %v728 = vmax.f32 %v664, 0.0
    %v729 = vmax.f32 %v665, 0.0
    %v730 = vmax.f32 %v666, 0.0
    %v731 = vmax.f32 %v667, 0.0
    %v732 = vmax.f32 %v668, 0.0
    %v733 = vmax.f32 %v669, 0.0
    %v734 = vmax.f32 %v670, 0.0
    %v735 = vmax.f32 %v671, 0.0
    %v736 = vmax.f32 %v672, 0.0
    %v737 = vmax.f32 %v673, 0.0
    %v738 = vmax.f32 %v674, 0.0
    %v739 = vmax.f32 %v675, 0.0
    %v740 = vmax.f32 %v676, 0.0
    %v741 = vpack.c.bf16 %v677, %v677
    %v742 = vpack.c.bf16 %v678, %v678
    %v743 = vpack.c.bf16 %v679, %v679
    %v744 = vpack.c.bf16 %v680, %v680
    %v745 = vpack.c.bf16 %v681, %v681
    %v746 = vpack.c.bf16 %v682, %v682
    %v747 = vpack.c.bf16 %v683, %v683
    %v748 = vpack.c.bf16 %v684, %v684
    %v749 = vpack.c.bf16 %v685, %v685
    %v750 = vpack.c.bf16 %v686, %v686
    %v751 = vpack.c.bf16 %v687, %v687
    %v752 = vpack.c.bf16 %v688, %v688
    %v753 = vpack.c.bf16 %v689, %v689
    %v754 = vpack.c.bf16 %v690, %v690
    %v755 = vpack.c.bf16 %v691, %v691
    %v756 = vpack.c.bf16 %v692, %v692
    %v757 = vpack.c.bf16 %v693, %v693
    %v758 = vpack.c.bf16 %v694, %v694
    %v759 = vpack.c.bf16 %v695, %v695
    %v760 = vpack.c.bf16 %v696, %v696
    %v761 = vpack.c.bf16 %v697, %v697
    %v762 = vpack.c.bf16 %v698, %v698
    %v763 = vpack.c.bf16 %v699, %v699
    %v764 = vpack.c.bf16 %v700, %v700
    %v765 = vpack.c.bf16 %v701, %v701
    %v766 = vpack.c.bf16 %v702, %v702
    %v767 = vpack.c.bf16 %v703, %v703
    %v768 = vpack.c.bf16 %v704, %v704
    %v769 = vpack.c.bf16 %v705, %v705
    %v770 = vpack.c.bf16 %v706, %v706
    %v771 = vpack.c.bf16 %v707, %v707
    %v772 = vpack.c.bf16 %v708, %v708
    %v773 = vpack.c.bf16 %v709, %v709
    %v774 = vpack.c.bf16 %v710, %v710
    %v775 = vpack.c.bf16 %v711, %v711
    %v776 = vpack.c.bf16 %v712, %v712
    %v777 = vpack.c.bf16 %v713, %v713
    %v778 = vpack.c.bf16 %v714, %v714
    %v779 = vpack.c.bf16 %v715, %v715
    %v780 = vpack.c.bf16 %v716, %v716
    %v781 = vpack.c.bf16 %v717, %v717
    %v782 = vpack.c.bf16 %v718, %v718
    %v783 = vpack.c.bf16 %v719, %v719
    %v784 = vpack.c.bf16 %v720, %v720
    %v785 = vpack.c.bf16 %v721, %v721
    %v786 = vpack.c.bf16 %v722, %v722
    %v787 = vpack.c.bf16 %v723, %v723
    %v788 = vpack.c.bf16 %v724, %v724
    %v789 = vpack.c.bf16 %v725, %v725
    %v790 = vpack.c.bf16 %v726, %v726
    %v791 = vpack.c.bf16 %v727, %v727
    %v792 = vpack.c.bf16 %v728, %v728
    %v793 = vpack.c.bf16 %v729, %v729
    %v794 = vpack.c.bf16 %v730, %v730
    %v795 = vpack.c.bf16 %v731, %v731
    %v796 = vpack.c.bf16 %v732, %v732
    %v797 = vpack.c.bf16 %v733, %v733
    %v798 = vpack.c.bf16 %v734, %v734
    %v799 = vpack.c.bf16 %v735, %v735
    %v800 = vpack.c.bf16 %v736, %v736
    %v801 = vpack.c.bf16 %v737, %v737
    %v802 = vpack.c.bf16 %v738, %v738
    %v803 = vpack.c.bf16 %v739, %v739
    %v804 = vpack.c.bf16 %v740, %v740
    %805 = vst [vmem:[#allocation2] sm:$0xf] %v741
    %806 = vst [vmem:[#allocation2 + $0x4] sm:$0xf] %v742
    %807 = vst [vmem:[#allocation2 + $0x8] sm:$0xf] %v743
    %808 = vst [vmem:[#allocation2 + $0xc] sm:$0xf] %v744
    %809 = vst [vmem:[#allocation2 + $0x10] sm:$0xf] %v745
    %810 = vst [vmem:[#allocation2 + $0x14] sm:$0xf] %v746
    %811 = vst [vmem:[#allocation2 + $0x18] sm:$0xf] %v747
    %812 = vst [vmem:[#allocation2 + $0x1c] sm:$0xf] %v748
    %813 = vst [vmem:[#allocation2 + $0x20] sm:$0xf] %v749
    %814 = vst [vmem:[#allocation2 + $0x24] sm:$0xf] %v750
    %815 = vst [vmem:[#allocation2 + $0x28] sm:$0xf] %v751
    %816 = vst [vmem:[#allocation2 + $0x2c] sm:$0xf] %v752
    %817 = vst [vmem:[#allocation2 + $0x30] sm:$0xf] %v753
    %818 = vst [vmem:[#allocation2 + $0x34] sm:$0xf] %v754
    %819 = vst [vmem:[#allocation2 + $0x38] sm:$0xf] %v755
    %820 = vst [vmem:[#allocation2 + $0x3c] sm:$0xf] %v756
    %821 = vst [vmem:[#allocation2 + $0x40] sm:$0xf] %v757
    %822 = vst [vmem:[#allocation2 + $0x44] sm:$0xf] %v758
    %823 = vst [vmem:[#allocation2 + $0x48] sm:$0xf] %v759
    %824 = vst [vmem:[#allocation2 + $0x4c] sm:$0xf] %v760
    %825 = vst [vmem:[#allocation2 + $0x50] sm:$0xf] %v761
    %826 = vst [vmem:[#allocation2 + $0x54] sm:$0xf] %v762
    %827 = vst [vmem:[#allocation2 + $0x58] sm:$0xf] %v763
    %828 = vst [vmem:[#allocation2 + $0x5c] sm:$0xf] %v764
    %829 = vst [vmem:[#allocation2 + $0x60] sm:$0xf] %v765
    %830 = vst [vmem:[#allocation2 + $0x64] sm:$0xf] %v766
    %831 = vst [vmem:[#allocation2 + $0x68] sm:$0xf] %v767
    %832 = vst [vmem:[#allocation2 + $0x6c] sm:$0xf] %v768
    %833 = vst [vmem:[#allocation2 + $0x70] sm:$0xf] %v769
    %834 = vst [vmem:[#allocation2 + $0x74] sm:$0xf] %v770
    %835 = vst [vmem:[#allocation2 + $0x78] sm:$0xf] %v771
    %836 = vst [vmem:[#allocation2 + $0x7c] sm:$0xf] %v772
    %837 = vst [vmem:[#allocation2 + $0x80] sm:$0xf] %v773
    %838 = vst [vmem:[#allocation2 + $0x84] sm:$0xf] %v774
    %839 = vst [vmem:[#allocation2 + $0x88] sm:$0xf] %v775
    %840 = vst [vmem:[#allocation2 + $0x8c] sm:$0xf] %v776
    %841 = vst [vmem:[#allocation2 + $0x90] sm:$0xf] %v777
    %842 = vst [vmem:[#allocation2 + $0x94] sm:$0xf] %v778
    %843 = vst [vmem:[#allocation2 + $0x98] sm:$0xf] %v779
    %844 = vst [vmem:[#allocation2 + $0x9c] sm:$0xf] %v780
    %845 = vst [vmem:[#allocation2 + $0xa0] sm:$0xf] %v781
    %846 = vst [vmem:[#allocation2 + $0xa4] sm:$0xf] %v782
    %847 = vst [vmem:[#allocation2 + $0xa8] sm:$0xf] %v783
    %848 = vst [vmem:[#allocation2 + $0xac] sm:$0xf] %v784
    %849 = vst [vmem:[#allocation2 + $0xb0] sm:$0xf] %v785
    %850 = vst [vmem:[#allocation2 + $0xb4] sm:$0xf] %v786
    %851 = vst [vmem:[#allocation2 + $0xb8] sm:$0xf] %v787
    %852 = vst [vmem:[#allocation2 + $0xbc] sm:$0xf] %v788
    %853 = vst [vmem:[#allocation2 + $0xc0] sm:$0xf] %v789
    %854 = vst [vmem:[#allocation2 + $0xc4] sm:$0xf] %v790
    %855 = vst [vmem:[#allocation2 + $0xc8] sm:$0xf] %v791
    %856 = vst [vmem:[#allocation2 + $0xcc] sm:$0xf] %v792
    %857 = vst [vmem:[#allocation2 + $0xd0] sm:$0xf] %v793
    %858 = vst [vmem:[#allocation2 + $0xd4] sm:$0xf] %v794
    %859 = vst [vmem:[#allocation2 + $0xd8] sm:$0xf] %v795
    %860 = vst [vmem:[#allocation2 + $0xdc] sm:$0xf] %v796
    %861 = vst [vmem:[#allocation2 + $0xe0] sm:$0xf] %v797
    %862 = vst [vmem:[#allocation2 + $0xe4] sm:$0xf] %v798
    %863 = vst [vmem:[#allocation2 + $0xe8] sm:$0xf] %v799
    %864 = vst [vmem:[#allocation2 + $0xec] sm:$0xf] %v800
    %865 = vst [vmem:[#allocation2 + $0xf0] sm:$0xf] %v801
    %866 = vst [vmem:[#allocation2 + $0xf4] sm:$0xf] %v802
    %867 = vst [vmem:[#allocation2 + $0xf8] sm:$0xf] %v803
    %868 = vst [vmem:[#allocation2 + $0xfc] sm:$0xf] %v804
    // Predicated region
    $region18: #{tpu_custom_call.1} parent=1 // pred_check
      _
    $region19: #{tpu_custom_call.1} parent=1 // pred_check_branch
      %870 = sbr.rel (0) target = $region21
    $region20: #{tpu_custom_call.1} parent=1 // pred_region
      %872 = vsyncadd [#allocation3], 0
      %s873 = sshll.u32 [#allocation2], 4
      %s874 = int_to_ptr.vmem [resolvable:$true] %s873
      %s875 = sshll.u32 %s4, 4
      %s876 = int_to_ptr.hbm [resolvable:$true] %s875
      %881 = dma.vmem_to_hbm [thread:$0]  %s874, 4096, %s876, [#allocation3], 64, 64, 4
    $region21: #{tpu_custom_call.1} parent=1 // pred_fallthru
      _
    // Predicated region
    $region22: #{tpu_custom_call.1} parent=1 // pred_check
      _
    $region23: #{tpu_custom_call.1} parent=1 // pred_check_branch
      %883 = sbr.rel (0) target = $region25
    $region24: #{tpu_custom_call.1} parent=1 // pred_region
      %885 = dma.done [#allocation3], 4096
    $region25: #{tpu_custom_call.1} parent=1 // pred_fallthru
      _
    %886 = vsyncpa [#allocation3], 1

</llo_original>
